<compile_context>
chip_gen: v7x
topology: tpu7x:2x2x1
jax: 0.10.0
libtpu: 0.0.40
codegen_flags: <defaults>
</compile_context>

<pallas_src>
import jax
import jax.numpy as jnp
from jax.experimental import pallas as pl
from jax.experimental.pallas import tpu as pltpu

EPS = 1e-5


def prenorm_kernel(x_ref, w_ref, b_ref, gamma_ref, beta_ref, o_ref, acc_ref):
    k = pl.program_id(1)

    # Zero the f32 accumulator on the first K step.
    @pl.when(k == 0)
    def _():
        acc_ref[...] = jnp.zeros_like(acc_ref)

    # fn(x): partial Linear(dim, dim) on the MXU, accumulated in f32.
    acc_ref[...] += jnp.dot(x_ref[...], w_ref[...],
                            preferred_element_type=jnp.float32)

    # On the last K step: bias + LayerNorm (biased variance, like torch) + store.
    @pl.when(k == pl.num_programs(1) - 1)
    def _():
        y = acc_ref[...] + b_ref[...]                       # (tm, D) + (1, D)
        mean = jnp.mean(y, axis=-1, keepdims=True)
        centered = y - mean
        var = jnp.mean(centered * centered, axis=-1, keepdims=True)
        y_hat = centered * jax.lax.rsqrt(var + EPS)
        o_ref[...] = (y_hat * gamma_ref[...] + beta_ref[...]).astype(o_ref.dtype)


def _round_up(x, m):
    return (x + m - 1) // m * m


def prenorm(x, w, b, gamma, beta, *, tm=256, tk=None):
    """x: (B, S, D); w: (D, D); b, gamma, beta: (D,). Returns (B, S, D)."""
    B, S, D = x.shape
    assert w.shape == (D, D)
    M = B * S
    x2 = x.reshape(M, D)

    # ---- token tiling: large tile (multiple of 8), pad M instead of asserting.
    tm = _round_up(min(tm, _round_up(M, 8)), 8)
    M_pad = _round_up(M, tm)
    if M_pad != M:
        x2 = jnp.pad(x2, ((0, M_pad - M), (0, 0)))

    # ---- reduction (K) tiling: keep W slabs double-bufferable for large D;
    # single K step when D is small / not 128-aligned.
    if tk is None:
        tk = D
        for cand in (512, 256, 128):
            if D % cand == 0:
                tk = min(cand, D)
                break
    assert D % tk == 0
    n_k = D // tk

    b2 = b.reshape(1, D)
    g2 = gamma.reshape(1, D)
    be2 = beta.reshape(1, D)

    # ---- VMEM budget for the chosen tiling (double-buffered pipeline bufs +
    # f32 accumulator scratch); cap with headroom under v7x's 64 MiB physical.
    out_isz = jnp.dtype(x.dtype).itemsize
    need = (2 * tm * tk * x2.dtype.itemsize        # x tiles
            + 2 * tk * D * w.dtype.itemsize        # W K-slabs
            + 2 * 3 * D * 4                        # bias / gamma / beta
            + 2 * tm * D * out_isz                 # output tiles
            + tm * D * 4)                          # f32 accumulator
    vmem_limit = int(min(max(2 * need, 32 * 1024 * 1024), 56 * 1024 * 1024))

    out = pl.pallas_call(
        prenorm_kernel,
        out_shape=jax.ShapeDtypeStruct((M_pad, D), x.dtype),
        grid_spec=pltpu.PrefetchScalarGridSpec(
            num_scalar_prefetch=0,
            grid=(M_pad // tm, n_k),
            in_specs=[
                pl.BlockSpec((tm, tk), lambda i, k: (i, k)),   # x tile
                pl.BlockSpec((tk, D), lambda i, k: (k, 0)),    # W K-slab
                pl.BlockSpec((1, D), lambda i, k: (0, 0)),     # bias
                pl.BlockSpec((1, D), lambda i, k: (0, 0)),     # gamma
                pl.BlockSpec((1, D), lambda i, k: (0, 0)),     # beta
            ],
            out_specs=pl.BlockSpec((tm, D), lambda i, k: (i, 0)),
            scratch_shapes=[pltpu.VMEM((tm, D), jnp.float32)],
        ),
        compiler_params=pltpu.CompilerParams(
            dimension_semantics=("parallel", "arbitrary"),
            vmem_limit_bytes=vmem_limit,
        ),
    )(x2, w, b2, g2, be2)

    return out[:M].reshape(B, S, D)


def prenorm_ref(x, w, b, gamma, beta):
    y = jnp.einsum("bsd,de->bse", x, w) + b
    mean = jnp.mean(y, axis=-1, keepdims=True)
    var = jnp.mean((y - mean) ** 2, axis=-1, keepdims=True)
    return (y - mean) / jnp.sqrt(var + EPS) * gamma + beta


if __name__ == "__main__":
    # Small but lane-dense shapes (D multiple of 128 so stores are unmasked).
    B, S, D = 2, 8, 256
    key = jax.random.PRNGKey(0)
    kx, kw, kb = jax.random.split(key, 3)

    x = jax.random.normal(kx, (B, S, D), dtype=jnp.float32)
    # fn = Linear(dim, dim) parameters (deterministic synthetic init)
    w = jax.random.normal(kw, (D, D), dtype=jnp.float32) / jnp.sqrt(D)
    b = jax.random.normal(kb, (D,), dtype=jnp.float32) * 0.1
    # LayerNorm(dim) parameters (PyTorch default init: ones / zeros)
    gamma = jnp.ones((D,), dtype=jnp.float32)
    beta = jnp.zeros((D,), dtype=jnp.float32)

    # tk=128 exercises the multi-step K accumulation path on these small shapes.
    out = prenorm(x, w, b, gamma, beta, tk=128)
    out = jax.block_until_ready(out)

    ref = prenorm_ref(x, w, b, gamma, beta)
    assert out.shape == (B, S, D)
    assert jnp.allclose(out, ref, atol=2e-3, rtol=2e-3), float(
        jnp.max(jnp.abs(out - ref)))
    print("KERNEL_OK")
</pallas_src>

<mosaic_0001>
module attributes {stable_mosaic.version = 11 : i64} {
  func.func @prenorm_kernel(%arg0: i32, %arg1: i32, %arg2: memref<16x128xf32, #tpu.memory_space<vmem>>, %arg3: memref<128x256xf32, #tpu.memory_space<vmem>>, %arg4: memref<1x256xf32, #tpu.memory_space<vmem>>, %arg5: memref<1x256xf32, #tpu.memory_space<vmem>>, %arg6: memref<1x256xf32, #tpu.memory_space<vmem>>, %arg7: memref<16x256xf32, #tpu.memory_space<vmem>>, %arg8: memref<16x256xf32, #tpu.memory_space<vmem>>) attributes {dimension_semantics = [#tpu.dimension_semantics<parallel>, #tpu.dimension_semantics<arbitrary>], iteration_bounds = array<i64: 1, 2>, scalar_prefetch = 0 : i64, scratch_operands = 1 : i64, tpu.core_type = #tpu.core_type<tc>, window_params = [{transform_indices = @transform_0, window_bounds = array<i64: 16, 128>}, {transform_indices = @transform_1, window_bounds = array<i64: 128, 256>}, {pipeline_mode = #tpu.pipeline_mode<synchronous>, transform_indices = @transform_2, window_bounds = array<i64: 1, 256>}, {pipeline_mode = #tpu.pipeline_mode<synchronous>, transform_indices = @transform_3, window_bounds = array<i64: 1, 256>}, {pipeline_mode = #tpu.pipeline_mode<synchronous>, transform_indices = @transform_4, window_bounds = array<i64: 1, 256>}, {transform_indices = @transform_5, window_bounds = array<i64: 16, 256>}]} {
    %c0_i32 = arith.constant 0 : i32
    %0 = arith.cmpi eq, %arg1, %c0_i32 : i32
    %1 = arith.extui %0 : i1 to i32
    %c0_i32_0 = arith.constant 0 : i32
    %2 = arith.cmpi ne, %1, %c0_i32_0 : i32
    scf.if %2 {
      %cst_9 = arith.constant 0.000000e+00 : f32
      %12 = vector.broadcast %cst_9 : f32 to vector<16x256xf32>
      %c0_10 = arith.constant 0 : index
      %c0_11 = arith.constant 0 : index
      %13 = vector.load %arg8[%c0_10, %c0_11] : memref<16x256xf32, #tpu.memory_space<vmem>>, vector<16x256xf32>
      tpu.vector_store %arg8[%c0_10, %c0_11], %12 {strides = array<i32>} : memref<16x256xf32, #tpu.memory_space<vmem>>, vector<16x256xf32>,
    } else {
    }
    %c0 = arith.constant 0 : index
    %c0_1 = arith.constant 0 : index
    %3 = vector.load %arg8[%c0, %c0_1] : memref<16x256xf32, #tpu.memory_space<vmem>>, vector<16x256xf32>
    %c0_2 = arith.constant 0 : index
    %c0_3 = arith.constant 0 : index
    %4 = vector.load %arg2[%c0_2, %c0_3] : memref<16x128xf32, #tpu.memory_space<vmem>>, vector<16x128xf32>
    %c0_4 = arith.constant 0 : index
    %c0_5 = arith.constant 0 : index
    %5 = vector.load %arg3[%c0_4, %c0_5] : memref<128x256xf32, #tpu.memory_space<vmem>>, vector<128x256xf32>
    %cst = arith.constant dense<0.000000e+00> : vector<16x256xf32>
    %6 = tpu.matmul %4, %5, %cst {dimension_numbers = #tpu.dot_dimension_numbers<[1], [0], [0], [1], [0, 0, 1, 1], [], []>} : vector<16x128xf32>, vector<128x256xf32>, vector<16x256xf32> -> vector<16x256xf32>
    %7 = arith.addf %3, %6 : vector<16x256xf32>
    %c0_6 = arith.constant 0 : index
    %c0_7 = arith.constant 0 : index
    %8 = vector.load %arg8[%c0_6, %c0_7] : memref<16x256xf32, #tpu.memory_space<vmem>>, vector<16x256xf32>
    tpu.vector_store %arg8[%c0_6, %c0_7], %7 {strides = array<i32>} : memref<16x256xf32, #tpu.memory_space<vmem>>, vector<16x256xf32>,
    %c1_i32 = arith.constant 1 : i32
    %9 = arith.cmpi eq, %arg1, %c1_i32 : i32
    %10 = arith.extui %9 : i1 to i32
    %c0_i32_8 = arith.constant 0 : i32
    %11 = arith.cmpi ne, %10, %c0_i32_8 : i32
    scf.if %11 {
      %c0_9 = arith.constant 0 : index
      %c0_10 = arith.constant 0 : index
      %12 = vector.load %arg8[%c0_9, %c0_10] : memref<16x256xf32, #tpu.memory_space<vmem>>, vector<16x256xf32>
      %c0_11 = arith.constant 0 : index
      %c0_12 = arith.constant 0 : index
      %13 = vector.load %arg4[%c0_11, %c0_12] : memref<1x256xf32, #tpu.memory_space<vmem>>, vector<1x256xf32>
      %14 = vector.broadcast %13 : vector<1x256xf32> to vector<16x256xf32>
      %15 = arith.addf %12, %14 : vector<16x256xf32>
      %cst_13 = arith.constant dense<0.000000e+00> : vector<16xf32>
      %16 = vector.multi_reduction <add>, %15, %cst_13 [1] : vector<16x256xf32> to vector<16xf32>
      %17 = vector.shape_cast %16 : vector<16xf32> to vector<16x1xf32>
      %cst_14 = arith.constant 2.560000e+02 : f32
      %18 = vector.broadcast %cst_14 : f32 to vector<16x1xf32>
      %19 = arith.divf %17, %18 : vector<16x1xf32>
      %20 = vector.broadcast %19 : vector<16x1xf32> to vector<16x256xf32>
      %21 = arith.subf %15, %20 : vector<16x256xf32>
      %22 = arith.mulf %21, %21 : vector<16x256xf32>
      %cst_15 = arith.constant dense<0.000000e+00> : vector<16xf32>
      %23 = vector.multi_reduction <add>, %22, %cst_15 [1] : vector<16x256xf32> to vector<16xf32>
      %24 = vector.shape_cast %23 : vector<16xf32> to vector<16x1xf32>
      %cst_16 = arith.constant 2.560000e+02 : f32
      %25 = vector.broadcast %cst_16 : f32 to vector<16x1xf32>
      %26 = arith.divf %24, %25 : vector<16x1xf32>
      %cst_17 = arith.constant 9.99999974E-6 : f32
      %27 = vector.broadcast %cst_17 : f32 to vector<16x1xf32>
      %28 = arith.addf %26, %27 : vector<16x1xf32>
      %29 = math.rsqrt %28 : vector<16x1xf32>
      %30 = vector.broadcast %29 : vector<16x1xf32> to vector<16x256xf32>
      %31 = arith.mulf %21, %30 : vector<16x256xf32>
      %c0_18 = arith.constant 0 : index
      %c0_19 = arith.constant 0 : index
      %32 = vector.load %arg5[%c0_18, %c0_19] : memref<1x256xf32, #tpu.memory_space<vmem>>, vector<1x256xf32>
      %33 = vector.broadcast %32 : vector<1x256xf32> to vector<16x256xf32>
      %34 = arith.mulf %31, %33 : vector<16x256xf32>
      %c0_20 = arith.constant 0 : index
      %c0_21 = arith.constant 0 : index
      %35 = vector.load %arg6[%c0_20, %c0_21] : memref<1x256xf32, #tpu.memory_space<vmem>>, vector<1x256xf32>
      %36 = vector.broadcast %35 : vector<1x256xf32> to vector<16x256xf32>
      %37 = arith.addf %34, %36 : vector<16x256xf32>
      %c0_22 = arith.constant 0 : index
      %c0_23 = arith.constant 0 : index
      %38 = vector.load %arg7[%c0_22, %c0_23] : memref<16x256xf32, #tpu.memory_space<vmem>>, vector<16x256xf32>
      tpu.vector_store %arg7[%c0_22, %c0_23], %37 {strides = array<i32>} : memref<16x256xf32, #tpu.memory_space<vmem>>, vector<16x256xf32>,
    } else {
    }
    return
  }
  func.func @transform_0(%arg0: i32, %arg1: i32) -> (i32, i32) {
    %c0_i32 = arith.constant 0 : i32
    return %arg0, %arg1 : i32, i32
  }
  func.func @transform_1(%arg0: i32, %arg1: i32) -> (i32, i32) {
    %c0_i32 = arith.constant 0 : i32
    %c0_i32_0 = arith.constant 0 : i32
    return %arg1, %c0_i32 : i32, i32
  }
  func.func @transform_2(%arg0: i32, %arg1: i32) -> (i32, i32) {
    %c0_i32 = arith.constant 0 : i32
    %c0_i32_0 = arith.constant 0 : i32
    %c0_i32_1 = arith.constant 0 : i32
    return %c0_i32, %c0_i32_0 : i32, i32
  }
  func.func @transform_3(%arg0: i32, %arg1: i32) -> (i32, i32) {
    %c0_i32 = arith.constant 0 : i32
    %c0_i32_0 = arith.constant 0 : i32
    %c0_i32_1 = arith.constant 0 : i32
    return %c0_i32, %c0_i32_0 : i32, i32
  }
  func.func @transform_4(%arg0: i32, %arg1: i32) -> (i32, i32) {
    %c0_i32 = arith.constant 0 : i32
    %c0_i32_0 = arith.constant 0 : i32
    %c0_i32_1 = arith.constant 0 : i32
    return %c0_i32, %c0_i32_0 : i32, i32
  }
  func.func @transform_5(%arg0: i32, %arg1: i32) -> (i32, i32) {
    %c0_i32 = arith.constant 0 : i32
    %c0_i32_0 = arith.constant 0 : i32
    return %arg0, %c0_i32 : i32, i32
  }
}

</mosaic_0001>

<llo_original>
// kernel: tpu_custom_call.1
$region0: #{tpu_custom_call.1}
  #allocation0 [shape = 'u32[]', space=smem, size = 0x4, offset = 0x4, fixed_abs, tag = 'smem constant byte address 0x4 - core index']
  #allocation1 [shape = 'u32[144,128]{1,0:T(1,128)}', space=vmem, size = 0x12000, scoped, tag = 'internal scratch']
  #allocation2 [shape = 'f32[16,256]{1,0:T(8,128)}', space=vmem, size = 0x4000, scoped, tag = 'scratch operand']
  %s0 = inlined_call_operand.hbm [shape: f32[16,256], index: 0, kind: input, shape index: {}]
  %s1 = inlined_call_operand.hbm [shape: f32[256,256], index: 1, kind: input, shape index: {}]
  %s2 = inlined_call_operand.vmem [shape: f32[1,256], index: 2, kind: input, shape index: {}]
  %s3 = inlined_call_operand.vmem [shape: f32[1,256], index: 3, kind: input, shape index: {}]
  %s4 = inlined_call_operand.vmem [shape: f32[1,256], index: 4, kind: input, shape index: {}]
  %s5 = inlined_call_operand.hbm [shape: f32[16,256], index: 5, kind: output, shape index: {}]
  %s6 = sld [smem:[#allocation0]]
  $region69: #{tpu_custom_call.1} parent=0
    _
  %s8 = ssub.s32 1, %s6
  %s9 = scalar_select 0, %s8, %s6
  $region1: #{tpu_custom_call.1} parent=0
    #allocation3 [shape = 'u8[16384]{0}', space=vmem, size = 0x4000, scoped, tag = 'input window, operand 0']
    #allocation4 [shape = 's32[2]{0}', space=sflag, size = 0x8, scoped, tag = 'scoped memory for tpu_custom_call.1']
    #allocation5 [shape = 's32[2]{0}', space=sflag, size = 0x8, scoped, tag = 'scoped memory for tpu_custom_call.1']
    #allocation6 [shape = 'u8[262144]{0}', space=vmem, size = 0x40000, scoped, tag = 'input window, operand 1']
    #allocation7 [shape = 's32[2]{0}', space=sflag, size = 0x8, scoped, tag = 'scoped memory for tpu_custom_call.1']
    #allocation8 [shape = 'u8[16384]{0}', space=vmem, size = 0x4000, scoped, tag = 'output window, operand 0, single buffered']
    %10 = vsyncpa [#allocation4], 0
    %s11 = scalar_lea.sflag [#allocation4], 1
    %12 = vsyncpa %s11, 0
    %13 = vsyncpa [#allocation7], 0
    %s14 = scalar_lea.sflag [#allocation7], 1
    %15 = vsyncpa %s14, 0
    %16 = vsyncpa [#allocation5], 0
    loop: start=0, step=1, limit=4
    $region2: #{tpu_custom_call.1} parent=1 // loop_pre_header
      _
    $region3: #{tpu_custom_call.1} parent=1 // loop_header
      %s18 = sphi 0, %s22
      %p19 = scmp.ge.s32.totalorder %s18, 4
      %s25 = sphi 0, %s37
      %s26 = sphi 0, %s33
      %s27 = sphi 0, %s25
      %s28 = sphi 0, %s26
      %s29 = sphi 0, %s27
      %s30 = sphi 0, %s28
      %s42 = sphi 0, %s44
      %s45 = sphi 0, %s42
      %s46 = sphi 0, %s45
      %s62 = sphi 0, %s46
      %s68 = sphi 0, %s70
      %s71 = sphi 0, %s68
      %s72 = sphi 0, %s71
      %s88 = sphi 0, %s72
      %s92 = sphi 0, %s92
      %s94 = sphi 0, %s92
      %s95 = sphi 0, %s94
      %s109 = sphi 0, %s95
      %s113 = sphi 0, %s113
      %s115 = sphi 0, %s113
      %s116 = sphi 0, %s115
      %s130 = sphi 0, %s116
      %s134 = sphi 0, %s134
      %s136 = sphi 0, %s134
      %s137 = sphi 0, %s136
      %s151 = sphi 0, %s137
      %s157 = sphi 0, %s159
      %s160 = sphi 0, %s157
      %s161 = sphi 0, %s160
      %s177 = sphi 0, %s161
    $region4: #{tpu_custom_call.1} parent=1 // loop_header_branch
      %21 = sbr.rel (%p19) target = $region8
    $region5: #{tpu_custom_call.1} parent=1 // loop_body
      %s23 = ssub.s32 %s18, 1
      %s24 = ssub.s32 %s18, 2
      %s31 = sadd.s32 1, %s26
      %p32 = scmp.ge.s32.totalorder %s31, 2
      %s33 = scalar_select %p32, 0, %s31
      %s34 = sadd.s32 1, %s25
      %s35 = scalar_select %p32, %s34, %s25
      %p36 = scmp.ge.s32.totalorder %s35, 1
      %s37 = scalar_select %p36, 0, %s35
      %s38 = ssub.s32 %s25, %s37
      %s39 = ssub.s32 %s26, %s33
      %s40 = sor.u32 %s38, %s39
      %p41 = scmp.eq.s32.totalorder %s40, 0
      %s43 = sadd.s32 %s42, 1
      %s44 = scalar_select %p41, %s42, %s43
      %p47 = pneg %p41
      %p48 = scmp.eq.s32.totalorder %s18, 1
      %p49 = por %p47, %p48
      %p50 = scmp.ne.s32.totalorder %s42, %s45
      %p51 = scmp.eq.s32.totalorder %s18, 0
      %p52 = por %p50, %p51
      %p53 = scmp.ne.s32.totalorder %s42, %s45
      %p54 = scmp.eq.s32.totalorder %s23, 1
      %p55 = por %p53, %p54
      %p56 = scmp.ne.s32.totalorder %s45, %s46
      %p57 = scmp.eq.s32.totalorder %s23, 0
      %p58 = por %p56, %p57
      %p59 = scmp.ne.s32.totalorder %s45, %s46
      %p60 = scmp.eq.s32.totalorder %s24, 1
      %p61 = por %p59, %p60
      %p63 = scmp.ne.s32.totalorder %s46, %s62
      %p64 = scmp.eq.s32.totalorder %s24, 0
      %p65 = por %p63, %p64
      %s66 = ssub.s32 %s26, %s33
      %p67 = scmp.eq.s32.totalorder %s66, 0
      %s69 = sadd.s32 %s68, 1
      %s70 = scalar_select %p67, %s68, %s69
      %p73 = pneg %p67
      %p74 = scmp.eq.s32.totalorder %s18, 1
      %p75 = por %p73, %p74
      %p76 = scmp.ne.s32.totalorder %s68, %s71
      %p77 = scmp.eq.s32.totalorder %s18, 0
      %p78 = por %p76, %p77
      %p79 = scmp.ne.s32.totalorder %s68, %s71
      %p80 = scmp.eq.s32.totalorder %s23, 1
      %p81 = por %p79, %p80
      %p82 = scmp.ne.s32.totalorder %s71, %s72
      %p83 = scmp.eq.s32.totalorder %s23, 0
      %p84 = por %p82, %p83
      %p85 = scmp.ne.s32.totalorder %s71, %s72
      %p86 = scmp.eq.s32.totalorder %s24, 1
      %p87 = por %p85, %p86
      %p89 = scmp.ne.s32.totalorder %s72, %s88
      %p90 = scmp.eq.s32.totalorder %s24, 0
      %p91 = por %p89, %p90
      %s93 = sadd.s32 %s92, 1
      %p96 = scmp.eq.s32.totalorder %s18, 1
      %p97 = scmp.ne.s32.totalorder %s92, %s94
      %p98 = scmp.eq.s32.totalorder %s18, 0
      %p99 = por %p97, %p98
      %p100 = scmp.ne.s32.totalorder %s92, %s94
      %p101 = scmp.eq.s32.totalorder %s23, 1
      %p102 = por %p100, %p101
      %p103 = scmp.ne.s32.totalorder %s94, %s95
      %p104 = scmp.eq.s32.totalorder %s23, 0
      %p105 = por %p103, %p104
      %p106 = scmp.ne.s32.totalorder %s94, %s95
      %p107 = scmp.eq.s32.totalorder %s24, 1
      %p108 = por %p106, %p107
      %p110 = scmp.ne.s32.totalorder %s95, %s109
      %p111 = scmp.eq.s32.totalorder %s24, 0
      %p112 = por %p110, %p111
      %s114 = sadd.s32 %s113, 1
      %p117 = scmp.eq.s32.totalorder %s18, 1
      %p118 = scmp.ne.s32.totalorder %s113, %s115
      %p119 = scmp.eq.s32.totalorder %s18, 0
      %p120 = por %p118, %p119
      %p121 = scmp.ne.s32.totalorder %s113, %s115
      %p122 = scmp.eq.s32.totalorder %s23, 1
      %p123 = por %p121, %p122
      %p124 = scmp.ne.s32.totalorder %s115, %s116
      %p125 = scmp.eq.s32.totalorder %s23, 0
      %p126 = por %p124, %p125
      %p127 = scmp.ne.s32.totalorder %s115, %s116
      %p128 = scmp.eq.s32.totalorder %s24, 1
      %p129 = por %p127, %p128
      %p131 = scmp.ne.s32.totalorder %s116, %s130
      %p132 = scmp.eq.s32.totalorder %s24, 0
      %p133 = por %p131, %p132
      %s135 = sadd.s32 %s134, 1
      %p138 = scmp.eq.s32.totalorder %s18, 1
      %p139 = scmp.ne.s32.totalorder %s134, %s136
      %p140 = scmp.eq.s32.totalorder %s18, 0
      %p141 = por %p139, %p140
      %p142 = scmp.ne.s32.totalorder %s134, %s136
      %p143 = scmp.eq.s32.totalorder %s23, 1
      %p144 = por %p142, %p143
      %p145 = scmp.ne.s32.totalorder %s136, %s137
      %p146 = scmp.eq.s32.totalorder %s23, 0
      %p147 = por %p145, %p146
      %p148 = scmp.ne.s32.totalorder %s136, %s137
      %p149 = scmp.eq.s32.totalorder %s24, 1
      %p150 = por %p148, %p149
      %p152 = scmp.ne.s32.totalorder %s137, %s151
      %p153 = scmp.eq.s32.totalorder %s24, 0
      %p154 = por %p152, %p153
      %s155 = ssub.s32 %s25, %s37
      %p156 = scmp.eq.s32.totalorder %s155, 0
      %s158 = sadd.s32 %s157, 1
      %s159 = scalar_select %p156, %s157, %s158
      %p162 = pneg %p156
      %p163 = scmp.eq.s32.totalorder %s18, 1
      %p164 = por %p162, %p163
      %p165 = scmp.ne.s32.totalorder %s157, %s160
      %p166 = scmp.eq.s32.totalorder %s18, 0
      %p167 = por %p165, %p166
      %p168 = scmp.ne.s32.totalorder %s157, %s160
      %p169 = scmp.eq.s32.totalorder %s23, 1
      %p170 = por %p168, %p169
      %p171 = scmp.ne.s32.totalorder %s160, %s161
      %p172 = scmp.eq.s32.totalorder %s23, 0
      %p173 = por %p171, %p172
      %p174 = scmp.ne.s32.totalorder %s160, %s161
      %p175 = scmp.eq.s32.totalorder %s24, 1
      %p176 = por %p174, %p175
      %p178 = scmp.ne.s32.totalorder %s161, %s177
      %p179 = scmp.eq.s32.totalorder %s24, 0
      %p180 = por %p178, %p179
      %p181 = scmp.le.s32.totalorder 1, %s18
      %p182 = scmp.lt.s32.totalorder %s18, 3
      %p183 = pnand %p181, %p182
      %p184 = pneg %p183
      // Predicated region
      $region9: #{tpu_custom_call.1} parent=5 // pred_check
        _
      $region10: #{tpu_custom_call.1} parent=5 // pred_check_branch
        %186 = sbr.rel (%p183) target = $region12
      $region11: #{tpu_custom_call.1} parent=5 // pred_region
        %s187 = ssub.s32 %s18, 1
        // Predicated region
        $region13: #{tpu_custom_call.1} parent=11 // pred_check
          %p188 = pneg %p105
        $region14: #{tpu_custom_call.1} parent=11 // pred_check_branch
          %190 = sbr.rel (%p188) target = $region16
        $region15: #{tpu_custom_call.1} parent=11 // pred_region
          _
        $region16: #{tpu_custom_call.1} parent=11 // pred_fallthru
          _
        // Predicated region
        $region17: #{tpu_custom_call.1} parent=11 // pred_check
          %p191 = pneg %p126
        $region18: #{tpu_custom_call.1} parent=11 // pred_check_branch
          %193 = sbr.rel (%p191) target = $region20
        $region19: #{tpu_custom_call.1} parent=11 // pred_region
          _
        $region20: #{tpu_custom_call.1} parent=11 // pred_fallthru
          _
        // Predicated region
        $region21: #{tpu_custom_call.1} parent=11 // pred_check
          %p194 = pneg %p147
        $region22: #{tpu_custom_call.1} parent=11 // pred_check_branch
          %196 = sbr.rel (%p194) target = $region24
        $region23: #{tpu_custom_call.1} parent=11 // pred_region
          _
        $region24: #{tpu_custom_call.1} parent=11 // pred_fallthru
          _
      $region12: #{tpu_custom_call.1} parent=5 // pred_fallthru
        _
      %p197 = scmp.lt.s32.totalorder %s18, 2
      // Predicated region
      $region25: #{tpu_custom_call.1} parent=5 // pred_check
        %p198 = pneg %p197
      $region26: #{tpu_custom_call.1} parent=5 // pred_check_branch
        %200 = sbr.rel (%p198) target = $region28
      $region27: #{tpu_custom_call.1} parent=5 // pred_region
        // Predicated region
        $region29: #{tpu_custom_call.1} parent=27 // pred_check
          %p201 = pneg %p52
        $region30: #{tpu_custom_call.1} parent=27 // pred_check_branch
          %203 = sbr.rel (%p201) target = $region32
        $region31: #{tpu_custom_call.1} parent=27 // pred_region
          %s204 = sand.u32 %s42, 1
          %s205 = scalar_lea.sflag [#allocation4], %s204
          %s206 = sand.u32 %s42, 1
          %s207 = smul.addr %s206, 16
          %s208 = scalar_lea.vmem [#allocation3], %s207
          %s209 = smul.u32 2, %s25
          %s211 = ssub.s32 256, 256
          %212 = vsyncadd %s205, %s211
          %s213 = smul.addr %s209, 2
          %s214 = sadd.s32 %s26, %s213
          %s215 = smul.addr %s214, 128
          %s216 = scalar_lea.hbm %s0, %s215
          %s217 = sshll.u32 %s208, 4
          %s218 = int_to_ptr.vmem [resolvable:$true] %s217
          %223 = dma.hbm_to_vmem [thread:$0]  %s216, 256, %s218, %s205, 256, 128, 8
        $region32: #{tpu_custom_call.1} parent=27 // pred_fallthru
          _
        // Predicated region
        $region33: #{tpu_custom_call.1} parent=27 // pred_check
          %p224 = pneg %p78
        $region34: #{tpu_custom_call.1} parent=27 // pred_check_branch
          %226 = sbr.rel (%p224) target = $region36
        $region35: #{tpu_custom_call.1} parent=27 // pred_region
          %s227 = sand.u32 %s68, 1
          %s228 = scalar_lea.sflag [#allocation7], %s227
          %s229 = sand.u32 %s68, 1
          %s230 = smul.addr %s229, 256
          %s231 = scalar_lea.vmem [#allocation6], %s230
          %s232 = smul.u32 16, %s26
          %s234 = ssub.s32 4096, 4096
          %235 = vsyncadd %s228, %s234
          %s236 = smul.addr %s232, 2
          %s237 = smul.addr %s236, 128
          %s238 = scalar_lea.hbm %s1, %s237
          %s239 = sshll.u32 %s231, 4
          %s240 = int_to_ptr.vmem [resolvable:$true] %s239
          %245 = dma.hbm_to_vmem [thread:$0]  %s238, 4096, %s240, %s228, 256, 256, 16
        $region36: #{tpu_custom_call.1} parent=27 // pred_fallthru
          _
      $region28: #{tpu_custom_call.1} parent=5 // pred_fallthru
        _
      %p246 = scmp.le.s32.totalorder 1, %s18
      %p247 = scmp.lt.s32.totalorder %s18, 3
      %p248 = pnand %p246, %p247
      %p249 = pneg %p248
      // Predicated region
      $region37: #{tpu_custom_call.1} parent=5 // pred_check
        _
      $region38: #{tpu_custom_call.1} parent=5 // pred_check_branch
        %251 = sbr.rel (%p248) target = $region40
      $region39: #{tpu_custom_call.1} parent=5 // pred_region
        %s252 = ssub.s32 %s18, 1
        %s253 = sand.u32 %s45, 1
        %s254 = scalar_lea.sflag [#allocation4], %s253
        %s255 = sand.u32 %s45, 1
        %s256 = smul.addr %s255, 16
        %s257 = scalar_lea.vmem [#allocation3], %s256
        // Predicated region
        $region41: #{tpu_custom_call.1} parent=39 // pred_check
          %p258 = pneg %p58
        $region42: #{tpu_custom_call.1} parent=39 // pred_check_branch
          %260 = sbr.rel (%p258) target = $region44
        $region43: #{tpu_custom_call.1} parent=39 // pred_region
          %261 = dma.done %s254, 256
        $region44: #{tpu_custom_call.1} parent=39 // pred_fallthru
          _
        %s262 = sand.u32 %s71, 1
        %s263 = scalar_lea.sflag [#allocation7], %s262
        %s264 = sand.u32 %s71, 1
        %s265 = smul.addr %s264, 256
        %s266 = scalar_lea.vmem [#allocation6], %s265
        // Predicated region
        $region45: #{tpu_custom_call.1} parent=39 // pred_check
          %p267 = pneg %p84
        $region46: #{tpu_custom_call.1} parent=39 // pred_check_branch
          %269 = sbr.rel (%p267) target = $region48
        $region47: #{tpu_custom_call.1} parent=39 // pred_region
          %270 = dma.done %s263, 4096
        $region48: #{tpu_custom_call.1} parent=39 // pred_fallthru
          _
        %s271 = sand.u32 %s45, 1
        %s272 = scalar_lea.sflag [#allocation4], %s271
        %s273 = sand.u32 %s45, 1
        %s274 = smul.addr %s273, 16
        %s275 = scalar_lea.vmem [#allocation3], %s274
        %p276 = pneg %p58
        %p277 = pneg %p55
        %s278 = sand.u32 %s71, 1
        %s279 = scalar_lea.sflag [#allocation7], %s278
        %s280 = sand.u32 %s71, 1
        %s281 = smul.addr %s280, 256
        %s282 = scalar_lea.vmem [#allocation6], %s281
        %p283 = pneg %p84
        %p284 = pneg %p81
        %p285 = pneg %p105
        %p286 = pneg %p102
        %p287 = pneg %p126
        %p288 = pneg %p123
        %p289 = pneg %p147
        %p290 = pneg %p144
        %p291 = pneg %p173
        %p292 = pneg %p170
        %s293 = smul.u32 2, %s27
        %s294 = smul.u32 16, %s28
        %s295 = smul.u32 2, %s27
        %p296 = scmp.eq.s32.totalorder %s28, 0
        // Predicated region
        $region49: #{tpu_custom_call.1} parent=39 // pred_check
          %p297 = pneg %p296
        $region50: #{tpu_custom_call.1} parent=39 // pred_check_branch
          %299 = sbr.rel (%p297) target = $region52
        $region51: #{tpu_custom_call.1} parent=39 // pred_region
          %300 = vst [vmem:[#allocation2] sm:$0xff] 0.0
          %301 = vst [vmem:[#allocation2 + $0x8] sm:$0xff] 0.0
          %302 = vst [vmem:[#allocation2 + $0x10] sm:$0xff] 0.0
          %303 = vst [vmem:[#allocation2 + $0x18] sm:$0xff] 0.0
        $region52: #{tpu_custom_call.1} parent=39 // pred_fallthru
          _
        %v304 = vld [vmem:[#allocation2] sm:$0xff]
        %v305 = vld [vmem:[#allocation2 + $0x8] sm:$0xff]
        %v306 = vld [vmem:[#allocation2 + $0x10] sm:$0xff]
        %v307 = vld [vmem:[#allocation2 + $0x18] sm:$0xff]
        %v308 = vld [vmem:[%s257] sm:$0xff]
        %v309 = vld [vmem:[%s257 + $0x8] sm:$0xff]
        %v310 = vld [vmem:[%s266] sm:$0xff]
        %v311 = vld [vmem:[%s266 + $0x8] sm:$0xff]
        %v312 = vld [vmem:[%s266 + $0x10] sm:$0xff]
        %v313 = vld [vmem:[%s266 + $0x18] sm:$0xff]
        %v314 = vld [vmem:[%s266 + $0x20] sm:$0xff]
        %v315 = vld [vmem:[%s266 + $0x28] sm:$0xff]
        %v316 = vld [vmem:[%s266 + $0x30] sm:$0xff]
        %v317 = vld [vmem:[%s266 + $0x38] sm:$0xff]
        %v318 = vld [vmem:[%s266 + $0x40] sm:$0xff]
        %v319 = vld [vmem:[%s266 + $0x48] sm:$0xff]
        %v320 = vld [vmem:[%s266 + $0x50] sm:$0xff]
        %v321 = vld [vmem:[%s266 + $0x58] sm:$0xff]
        %v322 = vld [vmem:[%s266 + $0x60] sm:$0xff]
        %v323 = vld [vmem:[%s266 + $0x68] sm:$0xff]
        %v324 = vld [vmem:[%s266 + $0x70] sm:$0xff]
        %v325 = vld [vmem:[%s266 + $0x78] sm:$0xff]
        %v326 = vld [vmem:[%s266 + $0x80] sm:$0xff]
        %v327 = vld [vmem:[%s266 + $0x88] sm:$0xff]
        %v328 = vld [vmem:[%s266 + $0x90] sm:$0xff]
        %v329 = vld [vmem:[%s266 + $0x98] sm:$0xff]
        %v330 = vld [vmem:[%s266 + $0xa0] sm:$0xff]
        %v331 = vld [vmem:[%s266 + $0xa8] sm:$0xff]
        %v332 = vld [vmem:[%s266 + $0xb0] sm:$0xff]
        %v333 = vld [vmem:[%s266 + $0xb8] sm:$0xff]
        %v334 = vld [vmem:[%s266 + $0xc0] sm:$0xff]
        %v335 = vld [vmem:[%s266 + $0xc8] sm:$0xff]
        %v336 = vld [vmem:[%s266 + $0xd0] sm:$0xff]
        %v337 = vld [vmem:[%s266 + $0xd8] sm:$0xff]
        %v338 = vld [vmem:[%s266 + $0xe0] sm:$0xff]
        %v339 = vld [vmem:[%s266 + $0xe8] sm:$0xff]
        %v340 = vld [vmem:[%s266 + $0xf0] sm:$0xff]
        %v341 = vld [vmem:[%s266 + $0xf8] sm:$0xff]
        %342 = vmatprep.subr.mxu0 %v311
        %343 = vmatpush1.msra.mxu0 %v310
        %344 = vmatprep.subr.mxu0 %v313
        %345 = vmatpush1.msra.mxu0 %v312
        %346 = vmatprep.subr.mxu0 %v315
        %347 = vmatpush1.msra.mxu0 %v314
        %348 = vmatprep.subr.mxu0 %v317
        %349 = vmatpush1.msra.mxu0 %v316
        %350 = vmatprep.subr.mxu0 %v319
        %351 = vmatpush1.msra.mxu0 %v318
        %352 = vmatprep.subr.mxu0 %v321
        %353 = vmatpush1.msra.mxu0 %v320
        %354 = vmatprep.subr.mxu0 %v323
        %355 = vmatpush1.msra.mxu0 %v322
        %356 = vmatprep.subr.mxu0 %v325
        %357 = vmatpush1.msra.mxu0 %v324
        %358 = vmatprep.subr.mxu0 %v327
        %359 = vmatpush1.msra.mxu0 %v326
        %360 = vmatprep.subr.mxu0 %v329
        %361 = vmatpush1.msra.mxu0 %v328
        %362 = vmatprep.subr.mxu0 %v331
        %363 = vmatpush1.msra.mxu0 %v330
        %364 = vmatprep.subr.mxu0 %v333
        %365 = vmatpush1.msra.mxu0 %v332
        %366 = vmatprep.subr.mxu0 %v335
        %367 = vmatpush1.msra.mxu0 %v334
        %368 = vmatprep.subr.mxu0 %v337
        %369 = vmatpush1.msra.mxu0 %v336
        %370 = vmatprep.subr.mxu0 %v339
        %371 = vmatpush1.msra.mxu0 %v338
        %372 = vmatprep.subr.mxu0 %v341
        %373 = vmatpush1.msra.mxu0 %v340
        %374 = vmatprep.subr.mxu0 0.0
        %375 = vmatpush1.msra.mxu0 0.0
        %376 = vmatprep.subr.mxu0 0.0
        %377 = vmatpush1.msra.mxu0 0.0
        %378 = vmatprep.subr.mxu0 0.0
        %379 = vmatpush1.msra.mxu0 0.0
        %380 = vmatprep.subr.mxu0 0.0
        %381 = vmatpush1.msra.mxu0 0.0
        %382 = vmatprep.subr.mxu0 0.0
        %383 = vmatpush1.msra.mxu0 0.0
        %384 = vmatprep.subr.mxu0 0.0
        %385 = vmatpush1.msra.mxu0 0.0
        %386 = vmatprep.subr.mxu0 0.0
        %387 = vmatpush1.msra.mxu0 0.0
        %388 = vmatprep.subr.mxu0 0.0
        %389 = vmatpush1.msra.mxu0 0.0
        %390 = vmatprep.subr.mxu0 0.0
        %391 = vmatpush1.msra.mxu0 0.0
        %392 = vmatprep.subr.mxu0 0.0
        %393 = vmatpush1.msra.mxu0 0.0
        %394 = vmatprep.subr.mxu0 0.0
        %395 = vmatpush1.msra.mxu0 0.0
        %396 = vmatprep.subr.mxu0 0.0
        %397 = vmatpush1.msra.mxu0 0.0
        %398 = vmatprep.subr.mxu0 0.0
        %399 = vmatpush1.msra.mxu0 0.0
        %400 = vmatprep.subr.mxu0 0.0
        %401 = vmatpush1.msra.mxu0 0.0
        %402 = vmatprep.subr.mxu0 0.0
        %403 = vmatpush1.msra.mxu0 0.0
        %404 = vmatprep.subr.mxu0 0.0
        %405 = vmatpush1.msra.mxu0 0.0
        %406 = vmatprep.mubr.f32.mxu0 0.0
        %407 = vmatmul.mubr.f32.gmra.mrb[0].mxu0 %v308
        %v408 = vpop.f32.mrb[0].mxu0
        %v409 = vadd.f32 0.0, %v408
        %v410 = vpop.f32.mrb[0].mxu0
        %v411 = vadd.f32 0.0, %v410
        %412 = vmatprep.mubr.f32.mxu0 0.0
        %413 = vmatmul.mubr.f32.gmra.mrb[0].mxu0 %v309
        %v414 = vpop.f32.mrb[0].mxu0
        %v415 = vadd.f32 0.0, %v414
        %v416 = vpop.f32.mrb[0].mxu0
        %v417 = vadd.f32 0.0, %v416
        %418 = vdwg.mxu0
        %v419 = vadd.f32 %v304, %v409
        %v420 = vadd.f32 %v305, %v411
        %v421 = vadd.f32 %v306, %v415
        %v422 = vadd.f32 %v307, %v417
        %423 = vst [vmem:[#allocation2] sm:$0xff] %v419
        %424 = vst [vmem:[#allocation2 + $0x8] sm:$0xff] %v420
        %425 = vst [vmem:[#allocation2 + $0x10] sm:$0xff] %v421
        %426 = vst [vmem:[#allocation2 + $0x18] sm:$0xff] %v422
        %p427 = scmp.eq.s32.totalorder %s28, 1
        // Predicated region
        $region53: #{tpu_custom_call.1} parent=39 // pred_check
          %p428 = pneg %p427
        $region54: #{tpu_custom_call.1} parent=39 // pred_check_branch
          %430 = sbr.rel (%p428) target = $region56
        $region55: #{tpu_custom_call.1} parent=39 // pred_region
          %v431 = vld [vmem:[#allocation2] sm:$0xff]
          %v432 = vld [vmem:[#allocation2 + $0x8] sm:$0xff]
          %v433 = vld [vmem:[#allocation2 + $0x10] sm:$0xff]
          %v434 = vld [vmem:[#allocation2 + $0x18] sm:$0xff]
          %v435 = vld [vmem:[%s2] sm:$0x3]
          %v437 = vlaneseq
          %v438 = vshrl.u32 %v437, 7
          %v439 = vsub.s32 0, %v438
          %v440 = vrot.slane %v435, %v439
          %v441 = vlaneseq
          %v442 = vshrl.u32 %v441, 7
          %v443 = vsub.s32 1, %v442
          %v444 = vrot.slane %v435, %v443
          %v447 = vadd.f32 %v431, %v440
          %v448 = vadd.f32 %v432, %v444
          %v449 = vadd.f32 %v433, %v440
          %v450 = vadd.f32 %v434, %v444
          %v451 = vadd.f32 %v447, %v448
          %452 = vadd.xlane.f32.xlu0 %v451
          %v453 = vpop.xlane.xlu0 %452
          %v454 = vadd.f32 %v449, %v450
          %455 = vadd.xlane.f32.xlu0 %v454
          %v456 = vpop.xlane.xlu0 %455
          %v457 = vrcp.pop 256.0
          %v458 = vmul.f32 %v453, %v457
          %v459 = vmul.f32 %v456, %v457
          %v460 = vsub.f32 %v447, %v458
          %v461 = vsub.f32 %v448, %v458
          %v462 = vsub.f32 %v449, %v459
          %v463 = vsub.f32 %v450, %v459
          %v464 = vmul.f32 %v460, %v460
          %v465 = vmul.f32 %v461, %v461
          %v466 = vmul.f32 %v462, %v462
          %v467 = vmul.f32 %v463, %v463
          %v468 = vadd.f32 %v464, %v465
          %469 = vadd.xlane.f32.xlu0 %v468
          %v470 = vpop.xlane.xlu0 %469
          %v471 = vadd.f32 %v466, %v467
          %472 = vadd.xlane.f32.xlu0 %v471
          %v473 = vpop.xlane.xlu0 %472
          %v474 = vmul.f32 %v470, %v457
          %v475 = vmul.f32 %v473, %v457
          %v476 = vadd.f32 %v474, 1e-05
          %v477 = vadd.f32 %v475, 1e-05
          %v478 = vrsqrt.pop %v476
          %v479 = vrsqrt.pop %v477
          %v480 = vmul.f32 %v460, %v478
          %v481 = vmul.f32 %v461, %v478
          %v482 = vmul.f32 %v462, %v479
          %v483 = vmul.f32 %v463, %v479
          %v484 = vld [vmem:[%s3] sm:$0x3]
          %v486 = vlaneseq
          %v487 = vshrl.u32 %v486, 7
          %v488 = vsub.s32 0, %v487
          %v489 = vrot.slane %v484, %v488
          %v490 = vlaneseq
          %v491 = vshrl.u32 %v490, 7
          %v492 = vsub.s32 1, %v491
          %v493 = vrot.slane %v484, %v492
          %v496 = vmul.f32 %v480, %v489
          %v497 = vmul.f32 %v481, %v493
          %v498 = vmul.f32 %v482, %v489
          %v499 = vmul.f32 %v483, %v493
          %v500 = vld [vmem:[%s4] sm:$0x3]
          %v502 = vlaneseq
          %v503 = vshrl.u32 %v502, 7
          %v504 = vsub.s32 0, %v503
          %v505 = vrot.slane %v500, %v504
          %v506 = vlaneseq
          %v507 = vshrl.u32 %v506, 7
          %v508 = vsub.s32 1, %v507
          %v509 = vrot.slane %v500, %v508
          %v512 = vadd.f32 %v496, %v505
          %v513 = vadd.f32 %v497, %v509
          %v514 = vadd.f32 %v498, %v505
          %v515 = vadd.f32 %v499, %v509
          %516 = vst [vmem:[#allocation8] sm:$0xff] %v512
          %517 = vst [vmem:[#allocation8 + $0x8] sm:$0xff] %v513
          %518 = vst [vmem:[#allocation8 + $0x10] sm:$0xff] %v514
          %519 = vst [vmem:[#allocation8 + $0x18] sm:$0xff] %v515
        $region56: #{tpu_custom_call.1} parent=39 // pred_fallthru
          _
        // Predicated region
        $region57: #{tpu_custom_call.1} parent=39 // pred_check
          %p520 = pneg %p170
        $region58: #{tpu_custom_call.1} parent=39 // pred_check_branch
          %522 = sbr.rel (%p520) target = $region60
        $region59: #{tpu_custom_call.1} parent=39 // pred_region
          %s523 = smul.u32 2, %s27
          %s525 = ssub.s32 512, 512
          %526 = vsyncadd [#allocation5], %s525
          %s527 = smul.addr %s523, 2
          %s528 = smul.addr %s527, 128
          %s529 = scalar_lea.hbm %s5, %s528
          %s530 = sshll.u32 [#allocation8], 4
          %s531 = int_to_ptr.vmem [resolvable:$true] %s530
          %536 = dma.vmem_to_hbm [thread:$0]  %s531, 512, %s529, [#allocation5], 256, 256, 16
        $region60: #{tpu_custom_call.1} parent=39 // pred_fallthru
          _
        // Predicated region
        $region61: #{tpu_custom_call.1} parent=39 // pred_check
          %p537 = pneg %p170
        $region62: #{tpu_custom_call.1} parent=39 // pred_check_branch
          %539 = sbr.rel (%p537) target = $region64
        $region63: #{tpu_custom_call.1} parent=39 // pred_region
          %540 = dma.done [#allocation5], 512
        $region64: #{tpu_custom_call.1} parent=39 // pred_fallthru
          _
      $region40: #{tpu_custom_call.1} parent=5 // pred_fallthru
        _
      %p541 = scmp.le.s32.totalorder 2, %s18
      // Predicated region
      $region65: #{tpu_custom_call.1} parent=5 // pred_check
        %p542 = pneg %p541
      $region66: #{tpu_custom_call.1} parent=5 // pred_check_branch
        %544 = sbr.rel (%p542) target = $region68
      $region67: #{tpu_custom_call.1} parent=5 // pred_region
        %s545 = ssub.s32 %s18, 2
      $region68: #{tpu_custom_call.1} parent=5 // pred_fallthru
        _
    $region6: #{tpu_custom_call.1} parent=1 // loop_footer
      %s22 = sadd.s32 1, %s18
    $region7: #{tpu_custom_call.1} parent=1 // loop_footer_branch
      %17 = sbr.rel target = $region3
    $region8: #{tpu_custom_call.1} parent=1 // loop_exit
      _
    %546 = vsyncpa [#allocation4], 1
    %s547 = scalar_lea.sflag [#allocation4], 1
    %548 = vsyncpa %s547, 1
    %549 = vsyncpa [#allocation7], 1
    %s550 = scalar_lea.sflag [#allocation7], 1
    %551 = vsyncpa %s550, 1
    %552 = vsyncpa [#allocation5], 1
    %s553 = scalar_lea.sflag [#allocation5], 1
    %554 = vsyncpa %s553, 1

</llo_original>
